<compile_context>
chip_gen: v5e
topology: v5e:2x2
jax: 0.10.0
libtpu: 0.0.40
codegen_flags: <defaults>
</compile_context>

<pallas_src>
import functools

import jax
import jax.numpy as jnp
from jax.experimental import pallas as pl
from jax.experimental.pallas import tpu as pltpu

_CORE_SPLITS = 2          # leading "parallel" grid axis (maps to 2 TCs on v7x)
_SUBLANE = 8
_LANE_CANDIDATES = (512, 256, 128)


def _pick_lane(n):
    for lane in _LANE_CANDIDATES:
        if n % lane == 0:
            return lane
    return 128  # rare fallback: one zero-pad copy


def _to_lane_major(arr, lane):
    """(rows, lane) lane-dense view of `arr`. A pure (no-copy) reshape when
    arr.size is a multiple of `lane`; otherwise a one-off zero-pad (padded
    zeros contribute 0 to the squared-error sum; we divide by the true N)."""
    flat = arr.reshape(-1)
    pad = (-flat.size) % lane
    if pad:
        # TODO(synk): sizes not divisible by 128 still take one pad copy.
        flat = jnp.pad(flat, (0, pad))
    return flat.reshape(-1, lane)


@functools.lru_cache(maxsize=None)
def _base_block_rows():
    try:
        kind = jax.devices()[0].device_kind.lower()
    except Exception:
        return 1024
    return 2048 if ("v6" in kind or "v7" in kind) else 1024


def _block_rows_for(rows, lane):
    br = _base_block_rows() * (512 // lane)   # keep ~2-4 MiB f32 per tile
    return rows if rows <= br else br         # full extent, or a multiple of 8


def _mse_partial_sum_kernel(x_ref, t_ref, o_ref, *, n_rows, block_rows,
                            inner_blocks):
    """Accumulates sum((x - t)^2) for this split's row blocks into a resident
    (8, 128) output block (broadcast scalar). Ragged / redundant blocks are
    row-masked so no host-side padding is needed."""
    c = pl.program_id(0)          # 2-way split ("parallel": one TC each on v7x)
    i = pl.program_id(1)          # sequential reduction axis

    @pl.when(i == 0)
    def _():
        o_ref[...] = jnp.zeros_like(o_ref)

    d = x_ref[...].astype(jnp.float32) - t_ref[...].astype(jnp.float32)
    sq = d * d
    row0 = (c * inner_blocks + i) * block_rows   # logical first row of block

    @pl.when(row0 + block_rows <= n_rows)        # full block: no mask
    def _():
        o_ref[...] += jnp.sum(sq)

    @pl.when(row0 + block_rows > n_rows)         # ragged / redundant block
    def _():
        row_ids = row0 + jax.lax.broadcasted_iota(jnp.int32, sq.shape, 0)
        o_ref[...] += jnp.sum(jnp.where(row_ids < n_rows, sq, 0.0))


@functools.partial(jax.jit, static_argnames=("n",))
def _mse_loss_from_target2d(x, target2d, *, n):
    lane = target2d.shape[1]
    x2 = _to_lane_major(x, lane)
    assert x2.shape == target2d.shape, (x2.shape, target2d.shape)
    rows = x2.shape[0]

    br = _block_rows_for(rows, lane)
    total_blocks = pl.cdiv(rows, br)
    inner = pl.cdiv(total_blocks, _CORE_SPLITS)

    def in_map(c, i):
        # Redundant trailing steps (odd block counts / tiny inputs) re-read
        # the last valid block; their contribution is masked to 0 in-kernel.
        return (jnp.minimum(c * inner + i, total_blocks - 1), 0)

    kernel = functools.partial(_mse_partial_sum_kernel, n_rows=rows,
                               block_rows=br, inner_blocks=inner)

    out = pl.pallas_call(
        kernel,
        out_shape=jax.ShapeDtypeStruct((_CORE_SPLITS * _SUBLANE, 128),
                                       jnp.float32),
        grid_spec=pltpu.PrefetchScalarGridSpec(
            num_scalar_prefetch=0,
            grid=(_CORE_SPLITS, inner),
            in_specs=[pl.BlockSpec((br, lane), in_map),
                      pl.BlockSpec((br, lane), in_map)],
            # Each split owns a disjoint (8, 128) accumulator block -> no race
            # when the leading axis is sharded across TensorCores.
            out_specs=pl.BlockSpec((_SUBLANE, 128), lambda c, i: (c, 0)),
        ),
        compiler_params=pltpu.CompilerParams(
            dimension_semantics=("parallel", "arbitrary"),
            vmem_limit_bytes=32 * 1024 * 1024,
        ),
    )(x2, target2d)

    # Each split's partial sum fills its whole (8, 128) block; take one
    # element per split, combine, and apply the static 1/N once.
    partials = out[::_SUBLANE, 0]
    return jnp.sum(partials) * jnp.float32(1.0 / n)


def mse_loss(x, target):
    """F.mse_loss(x, target) with 'mean' reduction, as a Pallas TPU kernel."""
    assert x.shape == target.shape, (x.shape, target.shape)
    lane = _pick_lane(int(x.size))
    return _mse_loss_from_target2d(x, _to_lane_major(target, lane),
                                   n=int(x.size))


class ContentLoss:
    """Mirror of the PyTorch module: stores target, computes loss as a side
    effect, returns the input unchanged (pass-through needs no kernel)."""

    def __init__(self, target_feature):
        self.target = jax.lax.stop_gradient(target_feature)   # .detach()
        self._n = int(self.target.size)
        lane = _pick_lane(self._n)
        # Constant target: build its lane-dense 2-D view once, not per call.
        self._target2d = _to_lane_major(self.target, lane)
        self.loss = None

    def __call__(self, x):
        assert x.shape == self.target.shape, (x.shape, self.target.shape)
        self.loss = _mse_loss_from_target2d(x, self._target2d, n=self._n)
        return x


if __name__ == "__main__":
    key = jax.random.PRNGKey(0)
    k_in, k_tgt, k_in2, k_tgt2 = jax.random.split(key, 4)

    # Primary case: small feature-map shape consistent with the module.
    B, C, H, W = 2, 4, 16, 16
    x = jax.random.normal(k_in, (B, C, H, W), dtype=jnp.float32)
    target = jax.random.normal(k_tgt, (B, C, H, W), dtype=jnp.float32)

    module = ContentLoss(target)
    out = jax.block_until_ready(module(x))
    loss = jax.block_until_ready(module.loss)

    ref_loss = jnp.mean((x - target) ** 2)
    assert out.shape == (B, C, H, W)
    assert jnp.array_equal(out, x)
    assert jnp.allclose(loss, ref_loss, atol=1e-6, rtol=1e-5), (loss, ref_loss)

    # Secondary case: row count not a multiple of the sublane width
    # (exercises the full-extent block + redundant-step masking paths).
    x2 = jax.random.normal(k_in2, (2, 3, 16, 16), dtype=jnp.float32)
    t2 = jax.random.normal(k_tgt2, (2, 3, 16, 16), dtype=jnp.float32)
    loss2 = jax.block_until_ready(mse_loss(x2, t2))
    ref2 = jnp.mean((x2 - t2) ** 2)
    assert jnp.allclose(loss2, ref2, atol=1e-6, rtol=1e-5), (loss2, ref2)

    print("KERNEL_OK")
</pallas_src>

<mosaic_0001>
module attributes {stable_mosaic.version = 11 : i64} {
  func.func @_mse_partial_sum_kernel(%arg0: i32, %arg1: i32, %arg2: memref<4x512xf32, #tpu.memory_space<vmem>>, %arg3: memref<4x512xf32, #tpu.memory_space<vmem>>, %arg4: memref<8x128xf32, #tpu.memory_space<vmem>>) attributes {dimension_semantics = [#tpu.dimension_semantics<parallel>, #tpu.dimension_semantics<arbitrary>], iteration_bounds = array<i64: 2, 1>, scalar_prefetch = 0 : i64, scratch_operands = 0 : i64, tpu.core_type = #tpu.core_type<tc>, window_params = [{transform_indices = @transform_0, window_bounds = array<i64: 4, 512>}, {transform_indices = @transform_1, window_bounds = array<i64: 4, 512>}, {transform_indices = @transform_2, window_bounds = array<i64: 8, 128>}]} {
    %c0_i32 = arith.constant 0 : i32
    %0 = arith.cmpi eq, %arg1, %c0_i32 : i32
    %1 = arith.extui %0 : i1 to i32
    %c0_i32_0 = arith.constant 0 : i32
    %2 = arith.cmpi ne, %1, %c0_i32_0 : i32
    scf.if %2 {
      %cst = arith.constant 0.000000e+00 : f32
      %18 = vector.broadcast %cst : f32 to vector<8x128xf32>
      %c0_10 = arith.constant 0 : index
      %c0_11 = arith.constant 0 : index
      %19 = vector.load %arg4[%c0_10, %c0_11] : memref<8x128xf32, #tpu.memory_space<vmem>>, vector<8x128xf32>
      tpu.vector_store %arg4[%c0_10, %c0_11], %18 {strides = array<i32>} : memref<8x128xf32, #tpu.memory_space<vmem>>, vector<8x128xf32>,
    } else {
    }
    %c0 = arith.constant 0 : index
    %c0_1 = arith.constant 0 : index
    %3 = vector.load %arg2[%c0, %c0_1] : memref<4x512xf32, #tpu.memory_space<vmem>>, vector<4x512xf32>
    %c0_2 = arith.constant 0 : index
    %c0_3 = arith.constant 0 : index
    %4 = vector.load %arg3[%c0_2, %c0_3] : memref<4x512xf32, #tpu.memory_space<vmem>>, vector<4x512xf32>
    %5 = arith.subf %3, %4 : vector<4x512xf32>
    %6 = arith.mulf %5, %5 : vector<4x512xf32>
    %c1_i32 = arith.constant 1 : i32
    %7 = arith.muli %arg0, %c1_i32 : i32
    %8 = arith.addi %7, %arg1 : i32
    %c4_i32 = arith.constant 4 : i32
    %9 = arith.muli %8, %c4_i32 : i32
    %c4_i32_4 = arith.constant 4 : i32
    %10 = arith.addi %9, %c4_i32_4 : i32
    %c4_i32_5 = arith.constant 4 : i32
    %11 = arith.cmpi sle, %10, %c4_i32_5 : i32
    %12 = arith.extui %11 : i1 to i32
    %c0_i32_6 = arith.constant 0 : i32
    %13 = arith.cmpi ne, %12, %c0_i32_6 : i32
    scf.if %13 {
      %c0_10 = arith.constant 0 : index
      %c0_11 = arith.constant 0 : index
      %18 = vector.load %arg4[%c0_10, %c0_11] : memref<8x128xf32, #tpu.memory_space<vmem>>, vector<8x128xf32>
      %19 = vector.shape_cast %6 : vector<4x512xf32> to vector<1x4x512xf32>
      %cst = arith.constant dense<0.000000e+00> : vector<1xf32>
      %20 = vector.multi_reduction <add>, %19, %cst [1, 2] : vector<1x4x512xf32> to vector<1xf32>
      %21 = vector.shape_cast %20 : vector<1xf32> to vector<1x1x1xf32>
      %22 = vector.extract %21[0, 0, 0] : f32 from vector<1x1x1xf32>
      %23 = vector.broadcast %22 : f32 to vector<8x128xf32>
      %24 = arith.addf %18, %23 : vector<8x128xf32>
      %c0_12 = arith.constant 0 : index
      %c0_13 = arith.constant 0 : index
      %25 = vector.load %arg4[%c0_12, %c0_13] : memref<8x128xf32, #tpu.memory_space<vmem>>, vector<8x128xf32>
      tpu.vector_store %arg4[%c0_12, %c0_13], %24 {strides = array<i32>} : memref<8x128xf32, #tpu.memory_space<vmem>>, vector<8x128xf32>,
    } else {
    }
    %c4_i32_7 = arith.constant 4 : i32
    %14 = arith.addi %9, %c4_i32_7 : i32
    %c4_i32_8 = arith.constant 4 : i32
    %15 = arith.cmpi sgt, %14, %c4_i32_8 : i32
    %16 = arith.extui %15 : i1 to i32
    %c0_i32_9 = arith.constant 0 : i32
    %17 = arith.cmpi ne, %16, %c0_i32_9 : i32
    scf.if %17 {
      %18 = tpu.iota {dimensions = array<i32: 0>} : vector<4x512xi32>
      %19 = vector.broadcast %9 : i32 to vector<4x512xi32>
      %20 = arith.addi %19, %18 : vector<4x512xi32>
      %c0_10 = arith.constant 0 : index
      %c0_11 = arith.constant 0 : index
      %21 = vector.load %arg4[%c0_10, %c0_11] : memref<8x128xf32, #tpu.memory_space<vmem>>, vector<8x128xf32>
      %c4_i32_12 = arith.constant 4 : i32
      %22 = vector.broadcast %c4_i32_12 : i32 to vector<4x512xi32>
      %23 = arith.cmpi slt, %20, %22 : vector<4x512xi32>
      %cst = arith.constant 0.000000e+00 : f32
      %24 = vector.broadcast %cst : f32 to vector<4x512xf32>
      %25 = arith.select %23, %6, %24 : vector<4x512xi1>, vector<4x512xf32>
      %26 = vector.shape_cast %25 : vector<4x512xf32> to vector<1x4x512xf32>
      %cst_13 = arith.constant dense<0.000000e+00> : vector<1xf32>
      %27 = vector.multi_reduction <add>, %26, %cst_13 [1, 2] : vector<1x4x512xf32> to vector<1xf32>
      %28 = vector.shape_cast %27 : vector<1xf32> to vector<1x1x1xf32>
      %29 = vector.extract %28[0, 0, 0] : f32 from vector<1x1x1xf32>
      %30 = vector.broadcast %29 : f32 to vector<8x128xf32>
      %31 = arith.addf %21, %30 : vector<8x128xf32>
      %c0_14 = arith.constant 0 : index
      %c0_15 = arith.constant 0 : index
      %32 = vector.load %arg4[%c0_14, %c0_15] : memref<8x128xf32, #tpu.memory_space<vmem>>, vector<8x128xf32>
      tpu.vector_store %arg4[%c0_14, %c0_15], %31 {strides = array<i32>} : memref<8x128xf32, #tpu.memory_space<vmem>>, vector<8x128xf32>,
    } else {
    }
    return
  }
  func.func @transform_0(%arg0: i32, %arg1: i32) -> (i32, i32) {
    %c1_i32 = arith.constant 1 : i32
    %0 = arith.muli %arg0, %c1_i32 : i32
    %1 = arith.addi %0, %arg1 : i32
    %c0_i32 = arith.constant 0 : i32
    %2 = arith.minsi %1, %c0_i32 : i32
    %c0_i32_0 = arith.constant 0 : i32
    %c0_i32_1 = arith.constant 0 : i32
    return %2, %c0_i32_0 : i32, i32
  }
  func.func @transform_1(%arg0: i32, %arg1: i32) -> (i32, i32) {
    %c1_i32 = arith.constant 1 : i32
    %0 = arith.muli %arg0, %c1_i32 : i32
    %1 = arith.addi %0, %arg1 : i32
    %c0_i32 = arith.constant 0 : i32
    %2 = arith.minsi %1, %c0_i32 : i32
    %c0_i32_0 = arith.constant 0 : i32
    %c0_i32_1 = arith.constant 0 : i32
    return %2, %c0_i32_0 : i32, i32
  }
  func.func @transform_2(%arg0: i32, %arg1: i32) -> (i32, i32) {
    %c0_i32 = arith.constant 0 : i32
    %c0_i32_0 = arith.constant 0 : i32
    return %arg0, %c0_i32 : i32, i32
  }
}

</mosaic_0001>

<llo_original>
// kernel: _mse_loss_from_target2d.1
$region0: #{_mse_loss_from_target2d.1}
  #allocation0 [shape = 'u32[]', space=smem, size = 0x4, offset = 0x4, fixed_abs, tag = 'smem constant byte address 0x4 - core index']
  #allocation1 [shape = 'u32[72,128]{1,0:T(1,128)}', space=vmem, size = 0x9000, scoped, tag = 'internal scratch']
  %s0 = inlined_call_operand.vmem [shape: f32[4,512], index: 0, kind: input, shape index: {}]
  %s1 = inlined_call_operand.vmem [shape: f32[4,512], index: 1, kind: input, shape index: {}]
  %s2 = inlined_call_operand.vmem [shape: f32[16,128], index: 2, kind: output, shape index: {}]
  %s3 = sld [smem:[#allocation0]]
  $region53: #{_mse_loss_from_target2d.1} parent=0
    _
  %s5 = ssub.s32 1, %s3
  %s6 = scalar_select 0, %s5, %s3
  loop: start=0, step=1, limit=4
  $region2: #{_mse_loss_from_target2d.1} parent=0 // loop_pre_header
    _
  $region3: #{_mse_loss_from_target2d.1} parent=0 // loop_header
    %s8 = sphi 0, %s12
    %p9 = scmp.ge.s32.totalorder %s8, 4
    %s15 = sphi 0, %s27
    %s16 = sphi 0, %s23
    %s17 = sphi 0, %s15
    %s18 = sphi 0, %s16
    %s19 = sphi 0, %s17
    %s20 = sphi 0, %s18
    %s36 = sphi 0, %s38
    %s39 = sphi 0, %s36
    %s40 = sphi 0, %s39
    %s56 = sphi 0, %s40
    %s68 = sphi 0, %s70
    %s71 = sphi 0, %s68
    %s72 = sphi 0, %s71
    %s88 = sphi 0, %s72
    %s94 = sphi 0, %s96
    %s97 = sphi 0, %s94
    %s98 = sphi 0, %s97
    %s114 = sphi 0, %s98
  $region4: #{_mse_loss_from_target2d.1} parent=0 // loop_header_branch
    %11 = sbr.rel (%p9) target = $region8
  $region5: #{_mse_loss_from_target2d.1} parent=0 // loop_body
    %s13 = ssub.s32 %s8, 1
    %s14 = ssub.s32 %s8, 2
    %s21 = sadd.s32 1, %s16
    %p22 = scmp.ge.s32.totalorder %s21, 1
    %s23 = scalar_select %p22, 0, %s21
    %s24 = sadd.s32 1, %s15
    %s25 = scalar_select %p22, %s24, %s15
    %p26 = scmp.ge.s32.totalorder %s25, 2
    %s27 = scalar_select %p26, 0, %s25
    %s28 = sadd.s32 %s15, %s16
    %p29 = scmp.lt.s32.totalorder %s28, 0
    %s30 = scalar_select %p29, %s28, 0
    %s31 = sadd.s32 %s27, %s23
    %p32 = scmp.lt.s32.totalorder %s31, 0
    %s33 = scalar_select %p32, %s31, 0
    %s34 = ssub.s32 %s30, %s33
    %p35 = scmp.eq.s32.totalorder %s34, 0
    %s37 = sadd.s32 %s36, 1
    %s38 = scalar_select %p35, %s36, %s37
    %p41 = pneg %p35
    %p42 = scmp.eq.s32.totalorder %s8, 1
    %p43 = por %p41, %p42
    %p44 = scmp.ne.s32.totalorder %s36, %s39
    %p45 = scmp.eq.s32.totalorder %s8, 0
    %p46 = por %p44, %p45
    %p47 = scmp.ne.s32.totalorder %s36, %s39
    %p48 = scmp.eq.s32.totalorder %s13, 1
    %p49 = por %p47, %p48
    %p50 = scmp.ne.s32.totalorder %s39, %s40
    %p51 = scmp.eq.s32.totalorder %s13, 0
    %p52 = por %p50, %p51
    %p53 = scmp.ne.s32.totalorder %s39, %s40
    %p54 = scmp.eq.s32.totalorder %s14, 1
    %p55 = por %p53, %p54
    %p57 = scmp.ne.s32.totalorder %s40, %s56
    %p58 = scmp.eq.s32.totalorder %s14, 0
    %p59 = por %p57, %p58
    %s60 = sadd.s32 %s15, %s16
    %p61 = scmp.lt.s32.totalorder %s60, 0
    %s62 = scalar_select %p61, %s60, 0
    %s63 = sadd.s32 %s27, %s23
    %p64 = scmp.lt.s32.totalorder %s63, 0
    %s65 = scalar_select %p64, %s63, 0
    %s66 = ssub.s32 %s62, %s65
    %p67 = scmp.eq.s32.totalorder %s66, 0
    %s69 = sadd.s32 %s68, 1
    %s70 = scalar_select %p67, %s68, %s69
    %p73 = pneg %p67
    %p74 = scmp.eq.s32.totalorder %s8, 1
    %p75 = por %p73, %p74
    %p76 = scmp.ne.s32.totalorder %s68, %s71
    %p77 = scmp.eq.s32.totalorder %s8, 0
    %p78 = por %p76, %p77
    %p79 = scmp.ne.s32.totalorder %s68, %s71
    %p80 = scmp.eq.s32.totalorder %s13, 1
    %p81 = por %p79, %p80
    %p82 = scmp.ne.s32.totalorder %s71, %s72
    %p83 = scmp.eq.s32.totalorder %s13, 0
    %p84 = por %p82, %p83
    %p85 = scmp.ne.s32.totalorder %s71, %s72
    %p86 = scmp.eq.s32.totalorder %s14, 1
    %p87 = por %p85, %p86
    %p89 = scmp.ne.s32.totalorder %s72, %s88
    %p90 = scmp.eq.s32.totalorder %s14, 0
    %p91 = por %p89, %p90
    %s92 = ssub.s32 %s15, %s27
    %p93 = scmp.eq.s32.totalorder %s92, 0
    %s95 = sadd.s32 %s94, 1
    %s96 = scalar_select %p93, %s94, %s95
    %p99 = pneg %p93
    %p100 = scmp.eq.s32.totalorder %s8, 1
    %p101 = por %p99, %p100
    %p102 = scmp.ne.s32.totalorder %s94, %s97
    %p103 = scmp.eq.s32.totalorder %s8, 0
    %p104 = por %p102, %p103
    %p105 = scmp.ne.s32.totalorder %s94, %s97
    %p106 = scmp.eq.s32.totalorder %s13, 1
    %p107 = por %p105, %p106
    %p108 = scmp.ne.s32.totalorder %s97, %s98
    %p109 = scmp.eq.s32.totalorder %s13, 0
    %p110 = por %p108, %p109
    %p111 = scmp.ne.s32.totalorder %s97, %s98
    %p112 = scmp.eq.s32.totalorder %s14, 1
    %p113 = por %p111, %p112
    %p115 = scmp.ne.s32.totalorder %s98, %s114
    %p116 = scmp.eq.s32.totalorder %s14, 0
    %p117 = por %p115, %p116
    %p118 = scmp.le.s32.totalorder 1, %s8
    %p119 = scmp.lt.s32.totalorder %s8, 3
    %p120 = pnand %p118, %p119
    %p121 = pneg %p120
    // Predicated region
    $region9: #{_mse_loss_from_target2d.1} parent=5 // pred_check
      _
    $region10: #{_mse_loss_from_target2d.1} parent=5 // pred_check_branch
      %123 = sbr.rel (%p120) target = $region12
    $region11: #{_mse_loss_from_target2d.1} parent=5 // pred_region
      %s124 = ssub.s32 %s8, 1
    $region12: #{_mse_loss_from_target2d.1} parent=5 // pred_fallthru
      _
    %p125 = scmp.lt.s32.totalorder %s8, 2
    // Predicated region
    $region13: #{_mse_loss_from_target2d.1} parent=5 // pred_check
      %p126 = pneg %p125
    $region14: #{_mse_loss_from_target2d.1} parent=5 // pred_check_branch
      %128 = sbr.rel (%p126) target = $region16
    $region15: #{_mse_loss_from_target2d.1} parent=5 // pred_region
      // Predicated region
      $region17: #{_mse_loss_from_target2d.1} parent=15 // pred_check
        %p129 = pneg %p46
      $region18: #{_mse_loss_from_target2d.1} parent=15 // pred_check_branch
        %131 = sbr.rel (%p129) target = $region20
      $region19: #{_mse_loss_from_target2d.1} parent=15 // pred_region
        %s132 = sadd.s32 %s15, %s16
        %p133 = scmp.lt.s32.totalorder %s132, 0
        %s134 = scalar_select %p133, %s132, 0
        %p135 = scmp.lt.s32.totalorder %s134, 0
        %s136 = scalar_select %p135, %s134, 0
        %s137 = smul.addr %s136, 4
        %s138 = smul.addr %s137, 4
        %s139 = scalar_lea.vmem %s0, %s138
        %s140 = sadd.s32 %s15, %s16
        %p141 = scmp.lt.s32.totalorder %s140, 0
        %s142 = scalar_select %p141, %s140, 0
      $region20: #{_mse_loss_from_target2d.1} parent=15 // pred_fallthru
        _
      // Predicated region
      $region21: #{_mse_loss_from_target2d.1} parent=15 // pred_check
        %p143 = pneg %p78
      $region22: #{_mse_loss_from_target2d.1} parent=15 // pred_check_branch
        %145 = sbr.rel (%p143) target = $region24
      $region23: #{_mse_loss_from_target2d.1} parent=15 // pred_region
        %s146 = sadd.s32 %s15, %s16
        %p147 = scmp.lt.s32.totalorder %s146, 0
        %s148 = scalar_select %p147, %s146, 0
        %p149 = scmp.lt.s32.totalorder %s148, 0
        %s150 = scalar_select %p149, %s148, 0
        %s151 = smul.addr %s150, 4
        %s152 = smul.addr %s151, 4
        %s153 = scalar_lea.vmem %s1, %s152
        %s154 = sadd.s32 %s15, %s16
        %p155 = scmp.lt.s32.totalorder %s154, 0
        %s156 = scalar_select %p155, %s154, 0
      $region24: #{_mse_loss_from_target2d.1} parent=15 // pred_fallthru
        _
    $region16: #{_mse_loss_from_target2d.1} parent=5 // pred_fallthru
      _
    %p157 = scmp.le.s32.totalorder 1, %s8
    %p158 = scmp.lt.s32.totalorder %s8, 3
    %p159 = pnand %p157, %p158
    %p160 = pneg %p159
    // Predicated region
    $region25: #{_mse_loss_from_target2d.1} parent=5 // pred_check
      _
    $region26: #{_mse_loss_from_target2d.1} parent=5 // pred_check_branch
      %162 = sbr.rel (%p159) target = $region28
    $region27: #{_mse_loss_from_target2d.1} parent=5 // pred_region
      %s163 = ssub.s32 %s8, 1
      %s164 = sadd.s32 %s17, %s18
      %p165 = scmp.lt.s32.totalorder %s164, 0
      %s166 = scalar_select %p165, %s164, 0
      %p167 = scmp.lt.s32.totalorder %s166, 0
      %s168 = scalar_select %p167, %s166, 0
      %s169 = smul.addr %s168, 4
      %s170 = smul.addr %s169, 4
      %s171 = scalar_lea.vmem %s0, %s170
      %p172 = pneg %p52
      %p173 = pneg %p49
      %s174 = sadd.s32 %s17, %s18
      %p175 = scmp.lt.s32.totalorder %s174, 0
      %s176 = scalar_select %p175, %s174, 0
      %p177 = scmp.lt.s32.totalorder %s176, 0
      %s178 = scalar_select %p177, %s176, 0
      %s179 = smul.addr %s178, 4
      %s180 = smul.addr %s179, 4
      %s181 = scalar_lea.vmem %s1, %s180
      %p182 = pneg %p84
      %p183 = pneg %p81
      %p184 = pneg %p110
      %p185 = pneg %p107
      %p186 = scmp.lt.s32.totalorder %s17, 1
      %s187 = scalar_select %p186, %s17, 1
      %s188 = smul.addr %s187, 8
      %s189 = scalar_lea.vmem %s2, %s188
      %s190 = sadd.s32 %s17, %s18
      %p191 = scmp.lt.s32.totalorder %s190, 0
      %s192 = scalar_select %p191, %s190, 0
      %p193 = scmp.lt.s32.totalorder %s192, 0
      %s194 = scalar_select %p193, %s192, 0
      %s195 = smul.addr %s194, 4
      %s196 = smul.addr %s195, 4
      %s197 = scalar_lea.vmem %s0, %s196
      %s198 = sadd.s32 %s17, %s18
      %p199 = scmp.lt.s32.totalorder %s198, 0
      %s200 = scalar_select %p199, %s198, 0
      %s201 = sadd.s32 %s17, %s18
      %p202 = scmp.lt.s32.totalorder %s201, 0
      %s203 = scalar_select %p202, %s201, 0
      %p204 = scmp.lt.s32.totalorder %s203, 0
      %s205 = scalar_select %p204, %s203, 0
      %s206 = smul.addr %s205, 4
      %s207 = smul.addr %s206, 4
      %s208 = scalar_lea.vmem %s1, %s207
      %s209 = sadd.s32 %s17, %s18
      %p210 = scmp.lt.s32.totalorder %s209, 0
      %s211 = scalar_select %p210, %s209, 0
      %p212 = scmp.lt.s32.totalorder %s17, 1
      %s213 = scalar_select %p212, %s17, 1
      %s214 = smul.addr %s213, 8
      %s215 = scalar_lea.vmem %s2, %s214
      %p216 = scmp.eq.s32.totalorder %s18, 0
      // Predicated region
      $region29: #{_mse_loss_from_target2d.1} parent=27 // pred_check
        %p217 = pneg %p216
      $region30: #{_mse_loss_from_target2d.1} parent=27 // pred_check_branch
        %219 = sbr.rel (%p217) target = $region32
      $region31: #{_mse_loss_from_target2d.1} parent=27 // pred_region
        %220 = vst [vmem:[%s215] sm:$0xff] 0.0
      $region32: #{_mse_loss_from_target2d.1} parent=27 // pred_fallthru
        _
      %v221 = vld [vmem:[%s197] sm:$0xff]
      %v222 = vld [vmem:[%s197 + $0x8] sm:$0xff]
      %v223 = vld [vmem:[%s208] sm:$0xff]
      %v224 = vld [vmem:[%s208 + $0x8] sm:$0xff]
      %v225 = vsub.f32 %v221, %v223
      %v226 = vsub.f32 %v222, %v224
      %v227 = vmul.f32 %v225, %v225
      %v228 = vmul.f32 %v226, %v226
      %s229 = sadd.s32 %s17, %s18
      %s230 = smul.u32 %s229, 4
      %s231 = sadd.s32 %s230, 4
      %p232 = scmp.le.s32.totalorder %s231, 4
      // Predicated region
      $region33: #{_mse_loss_from_target2d.1} parent=27 // pred_check
        %p233 = pneg %p232
      $region34: #{_mse_loss_from_target2d.1} parent=27 // pred_check_branch
        %235 = sbr.rel (%p233) target = $region36
      $region35: #{_mse_loss_from_target2d.1} parent=27 // pred_region
        %v236 = vld [vmem:[%s215] sm:$0xff]
        %239 = vst [vmem:[#allocation1] ss:$2 sm:$0xff] %v227
        %s240 = scalar_lea.vmem [#allocation1], 16
        %241 = vst [vmem:[%s240] ss:$2 sm:$0xff] %v228
        %v242 = vld.sshfl [vmem:[#allocation1] sm:$0xff pattern:$0x75316420]
        %v243 = vld.sshfl [vmem:[#allocation1 + $0x8] sm:$0xff pattern:$0x75316420]
        %v244 = vld.sshfl [vmem:[#allocation1 + $0x10] sm:$0xff pattern:$0x75316420]
        %v245 = vld.sshfl [vmem:[#allocation1 + $0x18] sm:$0xff pattern:$0x75316420]
        %vm250 = vcmask 1043456
        %v251 = vsel %vm250, %v242, 0.0
        %v252 = vsel %vm250, %v243, 0.0
        %v253 = vadd.f32 %v251, %v252
        %v254 = vsel %vm250, %v244, 0.0
        %v255 = vadd.f32 %v253, %v254
        %v256 = vsel %vm250, %v245, 0.0
        %v257 = vadd.f32 %v255, %v256
        %258 = vadd.xlane.f32.xlu0 %v257
        %v259 = vpop.xlane.xlu0 %258
        %v260 = vrot.slane %v259, 4
        %v261 = vadd.f32 %v259, %v260
        %v262 = vrot.slane %v261, 2
        %v263 = vadd.f32 %v261, %v262
        %v264 = vrot.slane %v263, 1
        %v265 = vadd.f32 %v263, %v264
        %s266 = vtos %v265
        %v267 = vstv %s266
        %v268 = vadd.f32 %v236, %v267
        %269 = vst [vmem:[%s215] sm:$0xff] %v268
      $region36: #{_mse_loss_from_target2d.1} parent=27 // pred_fallthru
        _
      %p270 = scmp.gt.s32.totalorder %s231, 4
      // Predicated region
      $region37: #{_mse_loss_from_target2d.1} parent=27 // pred_check
        %p271 = pneg %p270
      $region38: #{_mse_loss_from_target2d.1} parent=27 // pred_check_branch
        %273 = sbr.rel (%p271) target = $region40
      $region39: #{_mse_loss_from_target2d.1} parent=27 // pred_region
        %v274 = vlaneseq
        %v275 = vshrl.u32 %v274, 7
        %v276 = vstv %s230
        %v277 = vadd.s32 %v276, %v275
        %v278 = vld [vmem:[%s215] sm:$0xff]
        %vm279 = vcmp.lt.s32.totalorder %v277, 4
        %282 = vst [vmem:[#allocation1] ss:$2 sm:$0xff] %v227
        %s283 = scalar_lea.vmem [#allocation1], 16
        %284 = vst [vmem:[%s283] ss:$2 sm:$0xff] %v228
        %v285 = vld.sshfl [vmem:[#allocation1] sm:$0xff pattern:$0x75316420]
        %v286 = vld.sshfl [vmem:[#allocation1 + $0x8] sm:$0xff pattern:$0x75316420]
        %v287 = vld.sshfl [vmem:[#allocation1 + $0x10] sm:$0xff pattern:$0x75316420]
        %v288 = vld.sshfl [vmem:[#allocation1 + $0x18] sm:$0xff pattern:$0x75316420]
        %v293 = vsel %vm279, %v285, 0.0
        %v294 = vsel %vm279, %v286, 0.0
        %v295 = vsel %vm279, %v287, 0.0
        %v296 = vsel %vm279, %v288, 0.0
        %vm297 = vcmask 1043456
        %v298 = vsel %vm297, %v293, 0.0
        %v299 = vsel %vm297, %v294, 0.0
        %v300 = vadd.f32 %v298, %v299
        %v301 = vsel %vm297, %v295, 0.0
        %v302 = vadd.f32 %v300, %v301
        %v303 = vsel %vm297, %v296, 0.0
        %v304 = vadd.f32 %v302, %v303
        %305 = vadd.xlane.f32.xlu0 %v304
        %v306 = vpop.xlane.xlu0 %305
        %v307 = vrot.slane %v306, 4
        %v308 = vadd.f32 %v306, %v307
        %v309 = vrot.slane %v308, 2
        %v310 = vadd.f32 %v308, %v309
        %v311 = vrot.slane %v310, 1
        %v312 = vadd.f32 %v310, %v311
        %s313 = vtos %v312
        %v314 = vstv %s313
        %v315 = vadd.f32 %v278, %v314
        %316 = vst [vmem:[%s215] sm:$0xff] %v315
      $region40: #{_mse_loss_from_target2d.1} parent=27 // pred_fallthru
        _
      %p317 = scmp.lt.s32.totalorder %s17, 1
      %s318 = scalar_select %p317, %s17, 1
      %s319 = smul.addr %s318, 8
      %s320 = scalar_lea.vmem %s2, %s319
      // Predicated region
      $region41: #{_mse_loss_from_target2d.1} parent=27 // pred_check
        %p321 = pneg %p107
      $region42: #{_mse_loss_from_target2d.1} parent=27 // pred_check_branch
        %323 = sbr.rel (%p321) target = $region44
      $region43: #{_mse_loss_from_target2d.1} parent=27 // pred_region
        _
      $region44: #{_mse_loss_from_target2d.1} parent=27 // pred_fallthru
        _
    $region28: #{_mse_loss_from_target2d.1} parent=5 // pred_fallthru
      _
    %p324 = scmp.le.s32.totalorder 2, %s8
    // Predicated region
    $region45: #{_mse_loss_from_target2d.1} parent=5 // pred_check
      %p325 = pneg %p324
    $region46: #{_mse_loss_from_target2d.1} parent=5 // pred_check_branch
      %327 = sbr.rel (%p325) target = $region48
    $region47: #{_mse_loss_from_target2d.1} parent=5 // pred_region
      %s328 = ssub.s32 %s8, 2
      // Predicated region
      $region49: #{_mse_loss_from_target2d.1} parent=47 // pred_check
        %p329 = pneg %p113
      $region50: #{_mse_loss_from_target2d.1} parent=47 // pred_check_branch
        %331 = sbr.rel (%p329) target = $region52
      $region51: #{_mse_loss_from_target2d.1} parent=47 // pred_region
        %p332 = scmp.lt.s32.totalorder %s19, 1
        %s333 = scalar_select %p332, %s19, 1
        %s334 = smul.addr %s333, 8
        %s335 = scalar_lea.vmem %s2, %s334
      $region52: #{_mse_loss_from_target2d.1} parent=47 // pred_fallthru
        _
    $region48: #{_mse_loss_from_target2d.1} parent=5 // pred_fallthru
      _
  $region6: #{_mse_loss_from_target2d.1} parent=0 // loop_footer
    %s12 = sadd.s32 1, %s8
  $region7: #{_mse_loss_from_target2d.1} parent=0 // loop_footer_branch
    %7 = sbr.rel target = $region3
  $region8: #{_mse_loss_from_target2d.1} parent=0 // loop_exit
    _

</llo_original>
